<compile_context>
chip_gen: v7x
topology: tpu7x:2x2x1
jax: 0.10.0
libtpu: 0.0.40
codegen_flags: <defaults>
</compile_context>

<pallas_src>
import functools

import jax
import jax.numpy as jnp
from jax import lax
from jax.experimental import pallas as pl
from jax.experimental.pallas import tpu as pltpu


def _round_up(x, m):
    return (x + m - 1) // m * m


def _cdiv(a, b):
    return (a + b - 1) // b


def _gelu_exact(x):
    # PyTorch ACT2FN["gelu"] == exact erf-based GELU.
    return 0.5 * x * (1.0 + lax.erf(x / jnp.sqrt(2.0).astype(x.dtype)))


def mlm_head_kernel(x_ref, w1_ref, b1_ref, g_ref, be_ref, w2_ref, b2_ref,
                    o_ref, h_sc, *, eps):
    # Prediction-head transform: computed once per row tile (vocab tile 0),
    # cached in VMEM scratch and re-used for every vocab tile of this row tile.
    @pl.when(pl.program_id(1) == 0)
    def _():
        y = jnp.dot(x_ref[...], w1_ref[...],
                    preferred_element_type=jnp.float32) + b1_ref[...]
        y = _gelu_exact(y)
        mu = jnp.mean(y, axis=-1, keepdims=True)
        var = jnp.mean(jnp.square(y - mu), axis=-1, keepdims=True)
        yn = (y - mu) * lax.rsqrt(var + eps)
        h = yn * g_ref[...] + be_ref[...]
        h_sc[...] = h.astype(h_sc.dtype)

    # Decoder matmul over the current vocab tile, plus bias (f32 accumulate).
    logits = jnp.dot(h_sc[...], w2_ref[...],
                     preferred_element_type=jnp.float32) + b2_ref[...]
    o_ref[...] = logits.astype(o_ref.dtype)


def prepare_params(params, compute_dtype=jnp.bfloat16, tv=1024):
    """One-time parameter prep (do NOT call per forward):
    pre-transpose weights to row-major matmul layout, cast matmul operands to
    the MXU compute dtype, and pad the decoder weight/bias to a multiple of
    the vocab tile (so the hot path does zero HBM reshuffling).
    LayerNorm / bias params stay f32."""
    dec_w = jnp.asarray(params["dec_w"])                      # [V, H]
    dec_b = jnp.asarray(params["dec_b"], jnp.float32)         # [V]
    V = dec_w.shape[0]

    # Vocab tile: multiple of 128 lanes (ideally 256 for full MXU width),
    # never larger than the (rounded) vocab itself.
    tv = max(128, min(int(tv), _round_up(V, 128)))
    tv = _round_up(tv, 128)
    Vp = _round_up(V, tv)

    w2_t = dec_w.T.astype(compute_dtype)                      # [H, V]
    b2 = dec_b[None, :]                                       # [1, V]
    if Vp != V:
        w2_t = jnp.pad(w2_t, ((0, 0), (0, Vp - V)))
        b2 = jnp.pad(b2, ((0, 0), (0, Vp - V)))

    return {
        "w1_t": jnp.asarray(params["dense_w"]).T.astype(compute_dtype),  # [H, H]
        "b1":   jnp.asarray(params["dense_b"], jnp.float32)[None, :],    # [1, H]
        "ln_g": jnp.asarray(params["ln_g"], jnp.float32)[None, :],       # [1, H]
        "ln_b": jnp.asarray(params["ln_b"], jnp.float32)[None, :],       # [1, H]
        "w2_t": w2_t,                                                    # [H, Vp]
        "b2":   b2,                                                      # [1, Vp]
        "vocab_size": int(V),
        "tv": int(tv),
    }


def _vmem_capacity_bytes():
    try:
        info = pltpu.get_tpu_info()
        cap = getattr(info, "vmem_capacity_bytes", None)
        if cap:
            return int(cap)
    except Exception:
        pass
    return 64 * 1024 * 1024  # conservative (v7x per-TC)


def _vmem_bytes_estimate(tm, tv, H, cdt_size, out_size):
    """Rough upper bound on kernel VMEM footprint (double-buffered streams +
    scratch + f32 intermediates)."""
    b = 0
    b += 2 * tm * H * cdt_size          # x row tile (double buffer)
    b += 2 * H * H * cdt_size           # W1^T (grid-invariant; counted at 2x)
    b += 2 * 3 * H * 4                  # b1 / gamma / beta (f32)
    b += 2 * H * tv * cdt_size          # W2^T tile stream (double buffer)
    b += 2 * tv * 4                     # decoder bias tile
    b += 2 * tm * tv * out_size         # logits tile (double buffer)
    b += tm * H * cdt_size              # h_sc scratch
    b += 3 * tm * H * 4 + tm * tv * 4   # f32 transform / matmul intermediates
    return b


def only_mlm_head(sequence_output, prep, *, eps=1e-12, tm=1024,
                  out_dtype=jnp.bfloat16):
    """sequence_output: [B, S, H]. prep: output of prepare_params().
    Returns [B, S, V] logits in out_dtype (bf16 by default; f32 optional)."""
    B, S, H = sequence_output.shape
    w1_t, b1 = prep["w1_t"], prep["b1"]
    gamma, beta = prep["ln_g"], prep["ln_b"]
    w2_t, b2 = prep["w2_t"], prep["b2"]
    V = prep["vocab_size"]
    tv = prep["tv"]
    Vp = w2_t.shape[1]
    compute_dtype = w1_t.dtype
    cdt_size = jnp.dtype(compute_dtype).itemsize
    out_size = jnp.dtype(out_dtype).itemsize

    M = B * S
    x = sequence_output.reshape(M, H).astype(compute_dtype)

    # Row tile: clamp to the problem, 16-aligned (sublane packing for bf16).
    tm = max(16, min(int(tm), _round_up(M, 16)))
    tm = _round_up(tm, 16)
    # v7x megacore: prefer >= 2 row tiles when there is enough work so the
    # "parallel" row axis can be sharded across both TensorCores.
    if _cdiv(M, tm) < 2 and M > 256:
        tm = _round_up(_cdiv(M, 2), 16)

    # Fit the footprint into the (detected) VMEM budget; shrink tm if needed
    # (v7x only has 64 MiB per TensorCore).
    vmem_cap = _vmem_capacity_bytes()
    budget = int(vmem_cap * 0.72)
    while tm > 256 and _vmem_bytes_estimate(tm, tv, H, cdt_size, out_size) > budget:
        tm = max(256, _round_up(tm // 2, 16))
    est = _vmem_bytes_estimate(tm, tv, H, cdt_size, out_size)
    vmem_limit = max(32 * 1024 * 1024, min(budget, int(1.3 * est) + (2 << 20)))

    # cdiv grid: Pallas masks partial edge blocks, so no M-padding of x and no
    # output slice copy. Vp is already a multiple of tv (done in prepare_params).
    grid = (_cdiv(M, tm), Vp // tv)

    bytes_accessed = int(
        M * H * cdt_size                      # x
        + H * H * cdt_size                    # W1
        + grid[0] * H * Vp * cdt_size         # W2 streamed once per row tile
        + M * V * out_size)                   # logits writeback
    cost = pl.CostEstimate(
        flops=2 * M * H * H + 2 * M * H * Vp,
        transcendentals=M * H,
        bytes_accessed=bytes_accessed)

    out = pl.pallas_call(
        functools.partial(mlm_head_kernel, eps=eps),
        out_shape=jax.ShapeDtypeStruct((M, V), out_dtype),
        grid_spec=pltpu.PrefetchScalarGridSpec(
            num_scalar_prefetch=0,
            grid=grid,
            in_specs=[
                pl.BlockSpec((tm, H), lambda i, j: (i, 0)),   # x rows
                pl.BlockSpec((H, H), lambda i, j: (0, 0)),    # dense weight^T
                pl.BlockSpec((1, H), lambda i, j: (0, 0)),    # dense bias (f32)
                pl.BlockSpec((1, H), lambda i, j: (0, 0)),    # LN gamma (f32)
                pl.BlockSpec((1, H), lambda i, j: (0, 0)),    # LN beta (f32)
                pl.BlockSpec((H, tv), lambda i, j: (0, j)),   # decoder weight^T
                pl.BlockSpec((1, tv), lambda i, j: (0, j)),   # decoder bias (f32)
            ],
            out_specs=pl.BlockSpec((tm, tv), lambda i, j: (i, j)),
            scratch_shapes=[pltpu.VMEM((tm, H), compute_dtype)],
        ),
        compiler_params=pltpu.CompilerParams(
            dimension_semantics=("parallel", "arbitrary"),
            vmem_limit_bytes=vmem_limit),
        cost_estimate=cost,
    )(x, w1_t, b1, gamma, beta, w2_t, b2)

    return out.reshape(B, S, V)


def _reference(sequence_output, params, eps=1e-12):
    y = sequence_output @ params["dense_w"].T + params["dense_b"]
    y = _gelu_exact(y)
    mu = jnp.mean(y, axis=-1, keepdims=True)
    var = jnp.mean((y - mu) ** 2, axis=-1, keepdims=True)
    y = (y - mu) * lax.rsqrt(var + eps) * params["ln_g"] + params["ln_b"]
    return y @ params["dec_w"].T + params["dec_b"]


if __name__ == "__main__":
    B, S, H, V = 2, 8, 128, 256
    key = jax.random.PRNGKey(0)
    k_x, k_w1, k_b1, k_w2 = jax.random.split(key, 4)

    sequence_output = jax.random.normal(k_x, (B, S, H), dtype=jnp.float32)

    params = {
        # nn.Linear(H, H)
        "dense_w": jax.random.normal(k_w1, (H, H), jnp.float32) * (1.0 / H ** 0.5),
        "dense_b": jax.random.normal(k_b1, (H,), jnp.float32) * 0.02,
        # nn.LayerNorm(H)
        "ln_g": jnp.ones((H,), jnp.float32),
        "ln_b": jnp.zeros((H,), jnp.float32),
        # decoder nn.Linear(H, V, bias=False) + separate zero bias parameter
        "dec_w": jax.random.normal(k_w2, (V, H), jnp.float32) * (1.0 / H ** 0.5),
        "dec_b": jnp.zeros((V,), jnp.float32),
    }

    ref = _reference(sequence_output, params)

    # 1) f32 matmul path, f32 logits — tight correctness check.
    prep_f32 = prepare_params(params, compute_dtype=jnp.float32)
    out_f32 = jax.block_until_ready(
        only_mlm_head(sequence_output, prep_f32, out_dtype=jnp.float32))
    assert out_f32.shape == (B, S, V)
    assert jnp.allclose(out_f32, ref, atol=1e-4, rtol=1e-4), "f32 path mismatch"

    # 2) bf16 matmul path with bf16 logits (perf default on v6e/v7x) — looser,
    #    magnitude-aware tolerance (f32 accumulation; GELU/LN still in f32).
    prep_bf16 = prepare_params(params, compute_dtype=jnp.bfloat16)
    out_bf16 = jax.block_until_ready(
        only_mlm_head(sequence_output, prep_bf16, out_dtype=jnp.bfloat16))
    assert out_bf16.shape == (B, S, V)
    err = jnp.abs(out_bf16.astype(jnp.float32) - ref)
    rel = float(jnp.max(err / (1.0 + jnp.abs(ref))))
    assert rel < 0.05, f"bf16 path relative error too large: {rel}"

    print("KERNEL_OK")
</pallas_src>

<mosaic_0001>
module attributes {stable_mosaic.version = 11 : i64} {
  func.func @mlm_head_kernel(%arg0: i32, %arg1: i32, %arg2: memref<16x128xf32, #tpu.memory_space<vmem>>, %arg3: memref<128x128xf32, #tpu.memory_space<vmem>>, %arg4: memref<1x128xf32, #tpu.memory_space<vmem>>, %arg5: memref<1x128xf32, #tpu.memory_space<vmem>>, %arg6: memref<1x128xf32, #tpu.memory_space<vmem>>, %arg7: memref<128x256xf32, #tpu.memory_space<vmem>>, %arg8: memref<1x256xf32, #tpu.memory_space<vmem>>, %arg9: memref<16x256xf32, #tpu.memory_space<vmem>>, %arg10: memref<16x128xf32, #tpu.memory_space<vmem>>) attributes {dimension_semantics = [#tpu.dimension_semantics<parallel>, #tpu.dimension_semantics<arbitrary>], iteration_bounds = array<i64: 1, 1>, scalar_prefetch = 0 : i64, scratch_operands = 1 : i64, tpu.core_type = #tpu.core_type<tc>, window_params = [{transform_indices = @transform_0, window_bounds = array<i64: 16, 128>}, {pipeline_mode = #tpu.pipeline_mode<synchronous>, transform_indices = @transform_1, window_bounds = array<i64: 128, 128>}, {pipeline_mode = #tpu.pipeline_mode<synchronous>, transform_indices = @transform_2, window_bounds = array<i64: 1, 128>}, {pipeline_mode = #tpu.pipeline_mode<synchronous>, transform_indices = @transform_3, window_bounds = array<i64: 1, 128>}, {pipeline_mode = #tpu.pipeline_mode<synchronous>, transform_indices = @transform_4, window_bounds = array<i64: 1, 128>}, {transform_indices = @transform_5, window_bounds = array<i64: 128, 256>}, {transform_indices = @transform_6, window_bounds = array<i64: 1, 256>}, {transform_indices = @transform_7, window_bounds = array<i64: 16, 256>}]} {
    %c0_i32 = arith.constant 0 : i32
    %0 = arith.cmpi eq, %arg1, %c0_i32 : i32
    %1 = arith.extui %0 : i1 to i32
    %c0_i32_0 = arith.constant 0 : i32
    %2 = arith.cmpi ne, %1, %c0_i32_0 : i32
    scf.if %2 {
      %c0_8 = arith.constant 0 : index
      %c0_9 = arith.constant 0 : index
      %10 = vector.load %arg2[%c0_8, %c0_9] : memref<16x128xf32, #tpu.memory_space<vmem>>, vector<16x128xf32>
      %c0_10 = arith.constant 0 : index
      %c0_11 = arith.constant 0 : index
      %11 = vector.load %arg3[%c0_10, %c0_11] : memref<128x128xf32, #tpu.memory_space<vmem>>, vector<128x128xf32>
      %cst_12 = arith.constant dense<0.000000e+00> : vector<16x128xf32>
      %12 = tpu.matmul %10, %11, %cst_12 {dimension_numbers = #tpu.dot_dimension_numbers<[1], [0], [0], [1], [0, 0, 1, 1], [], []>} : vector<16x128xf32>, vector<128x128xf32>, vector<16x128xf32> -> vector<16x128xf32>
      %c0_13 = arith.constant 0 : index
      %c0_14 = arith.constant 0 : index
      %13 = vector.load %arg4[%c0_13, %c0_14] : memref<1x128xf32, #tpu.memory_space<vmem>>, vector<1x128xf32>
      %14 = vector.broadcast %13 : vector<1x128xf32> to vector<16x128xf32>
      %15 = arith.addf %12, %14 : vector<16x128xf32>
      %cst_15 = arith.constant 5.000000e-01 : f32
      %16 = vector.broadcast %cst_15 : f32 to vector<16x128xf32>
      %17 = arith.mulf %16, %15 : vector<16x128xf32>
      %cst_16 = arith.constant 2.000000e+00 : f32
      %18 = math.sqrt %cst_16 : f32
      %19 = vector.broadcast %18 : f32 to vector<16x128xf32>
      %20 = arith.divf %15, %19 : vector<16x128xf32>
      %21 = math.erf %20 : vector<16x128xf32>
      %cst_17 = arith.constant 1.000000e+00 : f32
      %22 = vector.broadcast %cst_17 : f32 to vector<16x128xf32>
      %23 = arith.addf %22, %21 : vector<16x128xf32>
      %24 = arith.mulf %17, %23 : vector<16x128xf32>
      %cst_18 = arith.constant dense<0.000000e+00> : vector<16xf32>
      %25 = vector.multi_reduction <add>, %24, %cst_18 [1] : vector<16x128xf32> to vector<16xf32>
      %26 = vector.shape_cast %25 : vector<16xf32> to vector<16x1xf32>
      %cst_19 = arith.constant 1.280000e+02 : f32
      %27 = vector.broadcast %cst_19 : f32 to vector<16x1xf32>
      %28 = arith.divf %26, %27 : vector<16x1xf32>
      %29 = vector.broadcast %28 : vector<16x1xf32> to vector<16x128xf32>
      %30 = arith.subf %24, %29 : vector<16x128xf32>
      %31 = arith.mulf %30, %30 : vector<16x128xf32>
      %cst_20 = arith.constant dense<0.000000e+00> : vector<16xf32>
      %32 = vector.multi_reduction <add>, %31, %cst_20 [1] : vector<16x128xf32> to vector<16xf32>
      %33 = vector.shape_cast %32 : vector<16xf32> to vector<16x1xf32>
      %cst_21 = arith.constant 1.280000e+02 : f32
      %34 = vector.broadcast %cst_21 : f32 to vector<16x1xf32>
      %35 = arith.divf %33, %34 : vector<16x1xf32>
      %36 = vector.broadcast %28 : vector<16x1xf32> to vector<16x128xf32>
      %37 = arith.subf %24, %36 : vector<16x128xf32>
      %cst_22 = arith.constant 9.99999996E-13 : f32
      %38 = vector.broadcast %cst_22 : f32 to vector<16x1xf32>
      %39 = arith.addf %35, %38 : vector<16x1xf32>
      %40 = math.rsqrt %39 : vector<16x1xf32>
      %41 = vector.broadcast %40 : vector<16x1xf32> to vector<16x128xf32>
      %42 = arith.mulf %37, %41 : vector<16x128xf32>
      %c0_23 = arith.constant 0 : index
      %c0_24 = arith.constant 0 : index
      %43 = vector.load %arg5[%c0_23, %c0_24] : memref<1x128xf32, #tpu.memory_space<vmem>>, vector<1x128xf32>
      %44 = vector.broadcast %43 : vector<1x128xf32> to vector<16x128xf32>
      %45 = arith.mulf %42, %44 : vector<16x128xf32>
      %c0_25 = arith.constant 0 : index
      %c0_26 = arith.constant 0 : index
      %46 = vector.load %arg6[%c0_25, %c0_26] : memref<1x128xf32, #tpu.memory_space<vmem>>, vector<1x128xf32>
      %47 = vector.broadcast %46 : vector<1x128xf32> to vector<16x128xf32>
      %48 = arith.addf %45, %47 : vector<16x128xf32>
      %c0_27 = arith.constant 0 : index
      %c0_28 = arith.constant 0 : index
      %49 = vector.load %arg10[%c0_27, %c0_28] : memref<16x128xf32, #tpu.memory_space<vmem>>, vector<16x128xf32>
      tpu.vector_store %arg10[%c0_27, %c0_28], %48 {strides = array<i32>} : memref<16x128xf32, #tpu.memory_space<vmem>>, vector<16x128xf32>,
    } else {
    }
    %c0 = arith.constant 0 : index
    %c0_1 = arith.constant 0 : index
    %3 = vector.load %arg10[%c0, %c0_1] : memref<16x128xf32, #tpu.memory_space<vmem>>, vector<16x128xf32>
    %c0_2 = arith.constant 0 : index
    %c0_3 = arith.constant 0 : index
    %4 = vector.load %arg7[%c0_2, %c0_3] : memref<128x256xf32, #tpu.memory_space<vmem>>, vector<128x256xf32>
    %cst = arith.constant dense<0.000000e+00> : vector<16x256xf32>
    %5 = tpu.matmul %3, %4, %cst {dimension_numbers = #tpu.dot_dimension_numbers<[1], [0], [0], [1], [0, 0, 1, 1], [], []>} : vector<16x128xf32>, vector<128x256xf32>, vector<16x256xf32> -> vector<16x256xf32>
    %c0_4 = arith.constant 0 : index
    %c0_5 = arith.constant 0 : index
    %6 = vector.load %arg8[%c0_4, %c0_5] : memref<1x256xf32, #tpu.memory_space<vmem>>, vector<1x256xf32>
    %7 = vector.broadcast %6 : vector<1x256xf32> to vector<16x256xf32>
    %8 = arith.addf %5, %7 : vector<16x256xf32>
    %c0_6 = arith.constant 0 : index
    %c0_7 = arith.constant 0 : index
    %9 = vector.load %arg9[%c0_6, %c0_7] : memref<16x256xf32, #tpu.memory_space<vmem>>, vector<16x256xf32>
    tpu.vector_store %arg9[%c0_6, %c0_7], %8 {strides = array<i32>} : memref<16x256xf32, #tpu.memory_space<vmem>>, vector<16x256xf32>,
    return
  }
  func.func @transform_0(%arg0: i32, %arg1: i32) -> (i32, i32) {
    %c0_i32 = arith.constant 0 : i32
    %c0_i32_0 = arith.constant 0 : i32
    return %arg0, %c0_i32 : i32, i32
  }
  func.func @transform_1(%arg0: i32, %arg1: i32) -> (i32, i32) {
    %c0_i32 = arith.constant 0 : i32
    %c0_i32_0 = arith.constant 0 : i32
    %c0_i32_1 = arith.constant 0 : i32
    return %c0_i32, %c0_i32_0 : i32, i32
  }
  func.func @transform_2(%arg0: i32, %arg1: i32) -> (i32, i32) {
    %c0_i32 = arith.constant 0 : i32
    %c0_i32_0 = arith.constant 0 : i32
    %c0_i32_1 = arith.constant 0 : i32
    return %c0_i32, %c0_i32_0 : i32, i32
  }
  func.func @transform_3(%arg0: i32, %arg1: i32) -> (i32, i32) {
    %c0_i32 = arith.constant 0 : i32
    %c0_i32_0 = arith.constant 0 : i32
    %c0_i32_1 = arith.constant 0 : i32
    return %c0_i32, %c0_i32_0 : i32, i32
  }
  func.func @transform_4(%arg0: i32, %arg1: i32) -> (i32, i32) {
    %c0_i32 = arith.constant 0 : i32
    %c0_i32_0 = arith.constant 0 : i32
    %c0_i32_1 = arith.constant 0 : i32
    return %c0_i32, %c0_i32_0 : i32, i32
  }
  func.func @transform_5(%arg0: i32, %arg1: i32) -> (i32, i32) {
    %c0_i32 = arith.constant 0 : i32
    %c0_i32_0 = arith.constant 0 : i32
    return %c0_i32, %arg1 : i32, i32
  }
  func.func @transform_6(%arg0: i32, %arg1: i32) -> (i32, i32) {
    %c0_i32 = arith.constant 0 : i32
    %c0_i32_0 = arith.constant 0 : i32
    return %c0_i32, %arg1 : i32, i32
  }
  func.func @transform_7(%arg0: i32, %arg1: i32) -> (i32, i32) {
    %c0_i32 = arith.constant 0 : i32
    return %arg0, %arg1 : i32, i32
  }
}

</mosaic_0001>

<llo_original>
// kernel: tpu_custom_call.1
$region0: #{tpu_custom_call.1}
  #allocation0 [shape = 'u32[]', space=smem, size = 0x4, offset = 0x4, fixed_abs, tag = 'smem constant byte address 0x4 - core index']
  #allocation1 [shape = 'u32[144,128]{1,0:T(1,128)}', space=vmem, size = 0x12000, scoped, tag = 'internal scratch']
  #allocation2 [shape = 'f32[16,128]{1,0:T(8,128)}', space=vmem, size = 0x2000, scoped, tag = 'scratch operand']
  %s0 = inlined_call_operand.hbm [shape: f32[16,128], index: 0, kind: input, shape index: {}]
  %s1 = inlined_call_operand.hbm [shape: f32[128,128], index: 1, kind: input, shape index: {}]
  %s2 = inlined_call_operand.vmem [shape: f32[1,128], index: 2, kind: input, shape index: {}]
  %s3 = inlined_call_operand.vmem [shape: f32[1,128], index: 3, kind: input, shape index: {}]
  %s4 = inlined_call_operand.vmem [shape: f32[1,128], index: 4, kind: input, shape index: {}]
  %s5 = inlined_call_operand.hbm [shape: f32[128,256], index: 5, kind: input, shape index: {}]
  %s6 = inlined_call_operand.vmem [shape: f32[1,256], index: 6, kind: input, shape index: {}]
  %s7 = inlined_call_operand.hbm [shape: f32[16,256], index: 7, kind: output, shape index: {}]
  %s8 = sld [smem:[#allocation0]]
  $region54: #{tpu_custom_call.1} parent=0
    _
  %s10 = ssub.s32 1, %s8
  %s11 = scalar_select 0, %s10, %s8
  $region1: #{tpu_custom_call.1} parent=0
    #allocation3 [shape = 'u8[8192]{0}', space=vmem, size = 0x2000, scoped, tag = 'input window, operand 0, single buffered']
    #allocation4 [shape = 's32[1]{0}', space=sflag, size = 0x4, scoped, tag = 'scoped memory for tpu_custom_call.1']
    #allocation5 [shape = 's32[1]{0}', space=sflag, size = 0x4, scoped, tag = 'scoped memory for tpu_custom_call.1']
    #allocation6 [shape = 'u8[65536]{0}', space=vmem, size = 0x10000, scoped, tag = 'input window, operand 1, single buffered']
    #allocation7 [shape = 's32[1]{0}', space=sflag, size = 0x4, scoped, tag = 'scoped memory for tpu_custom_call.1']
    #allocation8 [shape = 'u8[131072]{0}', space=vmem, size = 0x20000, scoped, tag = 'input window, operand 5, single buffered']
    #allocation9 [shape = 'u8[16384]{0}', space=vmem, size = 0x4000, scoped, tag = 'output window, operand 0, single buffered']
    %12 = vsyncpa [#allocation4], 0
    %13 = vsyncpa [#allocation7], 0
    %14 = vsyncpa [#allocation5], 0
    // Predicated region
    $region2: #{tpu_custom_call.1} parent=1 // pred_check
      _
    $region3: #{tpu_custom_call.1} parent=1 // pred_check_branch
      %16 = sbr.rel (0) target = $region5
    $region4: #{tpu_custom_call.1} parent=1 // pred_region
      %s18 = ssub.s32 256, 256
      %19 = vsyncadd [#allocation4], %s18
      %s20 = sshll.u32 [#allocation3], 4
      %s21 = int_to_ptr.vmem [resolvable:$true] %s20
      %26 = dma.hbm_to_vmem [thread:$0]  %s0, 256, %s21, [#allocation4], 128, 128, 8
    $region5: #{tpu_custom_call.1} parent=1 // pred_fallthru
      _
    // Predicated region
    $region6: #{tpu_custom_call.1} parent=1 // pred_check
      _
    $region7: #{tpu_custom_call.1} parent=1 // pred_check_branch
      %28 = sbr.rel (0) target = $region9
    $region8: #{tpu_custom_call.1} parent=1 // pred_region
      %s30 = ssub.s32 2048, 2048
      %31 = vsyncadd [#allocation7], %s30
      %s32 = sshll.u32 [#allocation6], 4
      %s33 = int_to_ptr.vmem [resolvable:$true] %s32
      %38 = dma.hbm_to_vmem [thread:$0]  %s1, 2048, %s33, [#allocation7], 128, 128, 8
    $region9: #{tpu_custom_call.1} parent=1 // pred_fallthru
      _
    // Predicated region
    $region10: #{tpu_custom_call.1} parent=1 // pred_check
      _
    $region11: #{tpu_custom_call.1} parent=1 // pred_check_branch
      %40 = sbr.rel (0) target = $region13
    $region12: #{tpu_custom_call.1} parent=1 // pred_region
      _
    $region13: #{tpu_custom_call.1} parent=1 // pred_fallthru
      _
    // Predicated region
    $region14: #{tpu_custom_call.1} parent=1 // pred_check
      _
    $region15: #{tpu_custom_call.1} parent=1 // pred_check_branch
      %42 = sbr.rel (0) target = $region17
    $region16: #{tpu_custom_call.1} parent=1 // pred_region
      _
    $region17: #{tpu_custom_call.1} parent=1 // pred_fallthru
      _
    // Predicated region
    $region18: #{tpu_custom_call.1} parent=1 // pred_check
      _
    $region19: #{tpu_custom_call.1} parent=1 // pred_check_branch
      %44 = sbr.rel (0) target = $region21
    $region20: #{tpu_custom_call.1} parent=1 // pred_region
      _
    $region21: #{tpu_custom_call.1} parent=1 // pred_fallthru
      _
    // Predicated region
    $region22: #{tpu_custom_call.1} parent=1 // pred_check
      _
    $region23: #{tpu_custom_call.1} parent=1 // pred_check_branch
      %46 = sbr.rel (0) target = $region25
    $region24: #{tpu_custom_call.1} parent=1 // pred_region
      %s48 = ssub.s32 4096, 4096
      %49 = vsyncadd [#allocation7], %s48
      %s50 = sshll.u32 [#allocation8], 4
      %s51 = int_to_ptr.vmem [resolvable:$true] %s50
      %56 = dma.hbm_to_vmem [thread:$0]  %s5, 4096, %s51, [#allocation7], 256, 256, 16
    $region25: #{tpu_custom_call.1} parent=1 // pred_fallthru
      _
    // Predicated region
    $region26: #{tpu_custom_call.1} parent=1 // pred_check
      _
    $region27: #{tpu_custom_call.1} parent=1 // pred_check_branch
      %58 = sbr.rel (0) target = $region29
    $region28: #{tpu_custom_call.1} parent=1 // pred_region
      _
    $region29: #{tpu_custom_call.1} parent=1 // pred_fallthru
      _
    // Predicated region
    $region30: #{tpu_custom_call.1} parent=1 // pred_check
      _
    $region31: #{tpu_custom_call.1} parent=1 // pred_check_branch
      %60 = sbr.rel (0) target = $region33
    $region32: #{tpu_custom_call.1} parent=1 // pred_region
      %61 = dma.done [#allocation4], 256
    $region33: #{tpu_custom_call.1} parent=1 // pred_fallthru
      _
    // Predicated region
    $region34: #{tpu_custom_call.1} parent=1 // pred_check
      _
    $region35: #{tpu_custom_call.1} parent=1 // pred_check_branch
      %63 = sbr.rel (0) target = $region37
    $region36: #{tpu_custom_call.1} parent=1 // pred_region
      %64 = dma.done [#allocation7], 2048
    $region37: #{tpu_custom_call.1} parent=1 // pred_fallthru
      _
    // Predicated region
    $region38: #{tpu_custom_call.1} parent=1 // pred_check
      _
    $region39: #{tpu_custom_call.1} parent=1 // pred_check_branch
      %66 = sbr.rel (0) target = $region41
    $region40: #{tpu_custom_call.1} parent=1 // pred_region
      %67 = dma.done [#allocation7], 4096
    $region41: #{tpu_custom_call.1} parent=1 // pred_fallthru
      _
    %p68 = scmp.eq.s32.totalorder 0, 0
    // Predicated region
    $region42: #{tpu_custom_call.1} parent=1 // pred_check
      %p69 = pneg %p68
    $region43: #{tpu_custom_call.1} parent=1 // pred_check_branch
      %71 = sbr.rel (%p69) target = $region45
    $region44: #{tpu_custom_call.1} parent=1 // pred_region
      %v72 = vld [vmem:[#allocation3] sm:$0xff]
      %v73 = vld [vmem:[#allocation3 + $0x8] sm:$0xff]
      %v74 = vld [vmem:[#allocation6] sm:$0xff]
      %v75 = vld [vmem:[#allocation6 + $0x8] sm:$0xff]
      %v76 = vld [vmem:[#allocation6 + $0x10] sm:$0xff]
      %v77 = vld [vmem:[#allocation6 + $0x18] sm:$0xff]
      %v78 = vld [vmem:[#allocation6 + $0x20] sm:$0xff]
      %v79 = vld [vmem:[#allocation6 + $0x28] sm:$0xff]
      %v80 = vld [vmem:[#allocation6 + $0x30] sm:$0xff]
      %v81 = vld [vmem:[#allocation6 + $0x38] sm:$0xff]
      %v82 = vld [vmem:[#allocation6 + $0x40] sm:$0xff]
      %v83 = vld [vmem:[#allocation6 + $0x48] sm:$0xff]
      %v84 = vld [vmem:[#allocation6 + $0x50] sm:$0xff]
      %v85 = vld [vmem:[#allocation6 + $0x58] sm:$0xff]
      %v86 = vld [vmem:[#allocation6 + $0x60] sm:$0xff]
      %v87 = vld [vmem:[#allocation6 + $0x68] sm:$0xff]
      %v88 = vld [vmem:[#allocation6 + $0x70] sm:$0xff]
      %v89 = vld [vmem:[#allocation6 + $0x78] sm:$0xff]
      %v90 = vld [vmem:[%s2] sm:$0x1]
      %v92 = vlaneseq
      %v93 = vshrl.u32 %v92, 7
      %v94 = vsub.s32 0, %v93
      %v95 = vrot.slane %v90, %v94
      %97 = vmatprep.subr.mxu0 0.0
      %98 = vmatpush1.msra.mxu0 %v74
      %99 = vmatprep.subr.mxu0 0.0
      %100 = vmatpush1.msra.mxu0 %v75
      %101 = vmatprep.subr.mxu0 0.0
      %102 = vmatpush1.msra.mxu0 %v76
      %103 = vmatprep.subr.mxu0 0.0
      %104 = vmatpush1.msra.mxu0 %v77
      %105 = vmatprep.subr.mxu0 0.0
      %106 = vmatpush1.msra.mxu0 %v78
      %107 = vmatprep.subr.mxu0 0.0
      %108 = vmatpush1.msra.mxu0 %v79
      %109 = vmatprep.subr.mxu0 0.0
      %110 = vmatpush1.msra.mxu0 %v80
      %111 = vmatprep.subr.mxu0 0.0
      %112 = vmatpush1.msra.mxu0 %v81
      %113 = vmatprep.subr.mxu0 0.0
      %114 = vmatpush1.msra.mxu0 %v82
      %115 = vmatprep.subr.mxu0 0.0
      %116 = vmatpush1.msra.mxu0 %v83
      %117 = vmatprep.subr.mxu0 0.0
      %118 = vmatpush1.msra.mxu0 %v84
      %119 = vmatprep.subr.mxu0 0.0
      %120 = vmatpush1.msra.mxu0 %v85
      %121 = vmatprep.subr.mxu0 0.0
      %122 = vmatpush1.msra.mxu0 %v86
      %123 = vmatprep.subr.mxu0 0.0
      %124 = vmatpush1.msra.mxu0 %v87
      %125 = vmatprep.subr.mxu0 0.0
      %126 = vmatpush1.msra.mxu0 %v88
      %127 = vmatprep.subr.mxu0 0.0
      %128 = vmatpush1.msra.mxu0 %v89
      %129 = vmatprep.subr.mxu0 0.0
      %130 = vmatpush1.msra.mxu0 0.0
      %131 = vmatprep.subr.mxu0 0.0
      %132 = vmatpush1.msra.mxu0 0.0
      %133 = vmatprep.subr.mxu0 0.0
      %134 = vmatpush1.msra.mxu0 0.0
      %135 = vmatprep.subr.mxu0 0.0
      %136 = vmatpush1.msra.mxu0 0.0
      %137 = vmatprep.subr.mxu0 0.0
      %138 = vmatpush1.msra.mxu0 0.0
      %139 = vmatprep.subr.mxu0 0.0
      %140 = vmatpush1.msra.mxu0 0.0
      %141 = vmatprep.subr.mxu0 0.0
      %142 = vmatpush1.msra.mxu0 0.0
      %143 = vmatprep.subr.mxu0 0.0
      %144 = vmatpush1.msra.mxu0 0.0
      %145 = vmatprep.subr.mxu0 0.0
      %146 = vmatpush1.msra.mxu0 0.0
      %147 = vmatprep.subr.mxu0 0.0
      %148 = vmatpush1.msra.mxu0 0.0
      %149 = vmatprep.subr.mxu0 0.0
      %150 = vmatpush1.msra.mxu0 0.0
      %151 = vmatprep.subr.mxu0 0.0
      %152 = vmatpush1.msra.mxu0 0.0
      %153 = vmatprep.subr.mxu0 0.0
      %154 = vmatpush1.msra.mxu0 0.0
      %155 = vmatprep.subr.mxu0 0.0
      %156 = vmatpush1.msra.mxu0 0.0
      %157 = vmatprep.subr.mxu0 0.0
      %158 = vmatpush1.msra.mxu0 0.0
      %159 = vmatprep.subr.mxu0 0.0
      %160 = vmatpush1.msra.mxu0 0.0
      %161 = vmatprep.mubr.f32.mxu0 0.0
      %162 = vmatmul.mubr.f32.gmra.mrb[0].mxu0 %v72
      %v163 = vpop.f32.mrb[0].mxu0
      %v164 = vadd.f32 %v95, %v163
      %v165 = vpop.f32.mrb[0].mxu0
      %166 = vmatprep.mubr.f32.mxu0 0.0
      %167 = vmatmul.mubr.f32.gmra.mrb[0].mxu0 %v73
      %v168 = vpop.f32.mrb[0].mxu0
      %v169 = vadd.f32 %v95, %v168
      %v170 = vpop.f32.mrb[0].mxu0
      %171 = vdwg.mxu0
      %v172 = vmul.f32 %v164, 0.5
      %v173 = vmul.f32 %v169, 0.5
      %v174 = vrcp.pop 1.4142135
      %v175 = vmul.f32 %v164, %v174
      %v176 = vmul.f32 %v169, %v174
      %v177 = verf.f32.pop %v175
      %v178 = verf.f32.pop %v176
      %v179 = vadd.f32 %v177, 1.0
      %v180 = vadd.f32 %v178, 1.0
      %v181 = vmul.f32 %v172, %v179
      %v182 = vmul.f32 %v173, %v180
      %183 = vadd.xlane.f32.xlu0 %v181
      %v184 = vpop.xlane.xlu0 %183
      %185 = vadd.xlane.f32.xlu0 %v182
      %v186 = vpop.xlane.xlu0 %185
      %v187 = vrcp.pop 128.0
      %v188 = vmul.f32 %v184, %v187
      %v189 = vmul.f32 %v186, %v187
      %v190 = vsub.f32 %v181, %v188
      %v191 = vsub.f32 %v182, %v189
      %v192 = vmul.f32 %v190, %v190
      %v193 = vmul.f32 %v191, %v191
      %194 = vadd.xlane.f32.xlu0 %v192
      %v195 = vpop.xlane.xlu0 %194
      %196 = vadd.xlane.f32.xlu0 %v193
      %v197 = vpop.xlane.xlu0 %196
      %v198 = vmul.f32 %v195, %v187
      %v199 = vmul.f32 %v197, %v187
      %v200 = vadd.f32 %v198, 1e-12
      %v201 = vadd.f32 %v199, 1e-12
      %v202 = vrsqrt.pop %v200
      %v203 = vrsqrt.pop %v201
      %v204 = vmul.f32 %v190, %v202
      %v205 = vmul.f32 %v191, %v203
      %v206 = vld [vmem:[%s3] sm:$0x1]
      %v208 = vlaneseq
      %v209 = vshrl.u32 %v208, 7
      %v210 = vsub.s32 0, %v209
      %v211 = vrot.slane %v206, %v210
      %v213 = vmul.f32 %v204, %v211
      %v214 = vmul.f32 %v205, %v211
      %v215 = vld [vmem:[%s4] sm:$0x1]
      %v217 = vlaneseq
      %v218 = vshrl.u32 %v217, 7
      %v219 = vsub.s32 0, %v218
      %v220 = vrot.slane %v215, %v219
      %v222 = vadd.f32 %v213, %v220
      %v223 = vadd.f32 %v214, %v220
      %224 = vst [vmem:[#allocation2] sm:$0xff] %v222
      %225 = vst [vmem:[#allocation2 + $0x8] sm:$0xff] %v223
    $region45: #{tpu_custom_call.1} parent=1 // pred_fallthru
      _
    %v226 = vld [vmem:[#allocation2] sm:$0xff]
    %v227 = vld [vmem:[#allocation2 + $0x8] sm:$0xff]
    %v228 = vld [vmem:[#allocation8] sm:$0xff]
    %v229 = vld [vmem:[#allocation8 + $0x8] sm:$0xff]
    %v230 = vld [vmem:[#allocation8 + $0x10] sm:$0xff]
    %v231 = vld [vmem:[#allocation8 + $0x18] sm:$0xff]
    %v232 = vld [vmem:[#allocation8 + $0x20] sm:$0xff]
    %v233 = vld [vmem:[#allocation8 + $0x28] sm:$0xff]
    %v234 = vld [vmem:[#allocation8 + $0x30] sm:$0xff]
    %v235 = vld [vmem:[#allocation8 + $0x38] sm:$0xff]
    %v236 = vld [vmem:[#allocation8 + $0x40] sm:$0xff]
    %v237 = vld [vmem:[#allocation8 + $0x48] sm:$0xff]
    %v238 = vld [vmem:[#allocation8 + $0x50] sm:$0xff]
    %v239 = vld [vmem:[#allocation8 + $0x58] sm:$0xff]
    %v240 = vld [vmem:[#allocation8 + $0x60] sm:$0xff]
    %v241 = vld [vmem:[#allocation8 + $0x68] sm:$0xff]
    %v242 = vld [vmem:[#allocation8 + $0x70] sm:$0xff]
    %v243 = vld [vmem:[#allocation8 + $0x78] sm:$0xff]
    %v244 = vld [vmem:[#allocation8 + $0x80] sm:$0xff]
    %v245 = vld [vmem:[#allocation8 + $0x88] sm:$0xff]
    %v246 = vld [vmem:[#allocation8 + $0x90] sm:$0xff]
    %v247 = vld [vmem:[#allocation8 + $0x98] sm:$0xff]
    %v248 = vld [vmem:[#allocation8 + $0xa0] sm:$0xff]
    %v249 = vld [vmem:[#allocation8 + $0xa8] sm:$0xff]
    %v250 = vld [vmem:[#allocation8 + $0xb0] sm:$0xff]
    %v251 = vld [vmem:[#allocation8 + $0xb8] sm:$0xff]
    %v252 = vld [vmem:[#allocation8 + $0xc0] sm:$0xff]
    %v253 = vld [vmem:[#allocation8 + $0xc8] sm:$0xff]
    %v254 = vld [vmem:[#allocation8 + $0xd0] sm:$0xff]
    %v255 = vld [vmem:[#allocation8 + $0xd8] sm:$0xff]
    %v256 = vld [vmem:[#allocation8 + $0xe0] sm:$0xff]
    %v257 = vld [vmem:[#allocation8 + $0xe8] sm:$0xff]
    %v258 = vld [vmem:[#allocation8 + $0xf0] sm:$0xff]
    %v259 = vld [vmem:[#allocation8 + $0xf8] sm:$0xff]
    %v260 = vld [vmem:[%s6] sm:$0x3]
    %v262 = vlaneseq
    %v263 = vshrl.u32 %v262, 7
    %v264 = vsub.s32 0, %v263
    %v265 = vrot.slane %v260, %v264
    %v266 = vlaneseq
    %v267 = vshrl.u32 %v266, 7
    %v268 = vsub.s32 1, %v267
    %v269 = vrot.slane %v260, %v268
    %272 = vmatprep.subr.mxu0 %v229
    %273 = vmatpush1.msra.mxu0 %v228
    %274 = vmatprep.subr.mxu0 %v231
    %275 = vmatpush1.msra.mxu0 %v230
    %276 = vmatprep.subr.mxu0 %v233
    %277 = vmatpush1.msra.mxu0 %v232
    %278 = vmatprep.subr.mxu0 %v235
    %279 = vmatpush1.msra.mxu0 %v234
    %280 = vmatprep.subr.mxu0 %v237
    %281 = vmatpush1.msra.mxu0 %v236
    %282 = vmatprep.subr.mxu0 %v239
    %283 = vmatpush1.msra.mxu0 %v238
    %284 = vmatprep.subr.mxu0 %v241
    %285 = vmatpush1.msra.mxu0 %v240
    %286 = vmatprep.subr.mxu0 %v243
    %287 = vmatpush1.msra.mxu0 %v242
    %288 = vmatprep.subr.mxu0 %v245
    %289 = vmatpush1.msra.mxu0 %v244
    %290 = vmatprep.subr.mxu0 %v247
    %291 = vmatpush1.msra.mxu0 %v246
    %292 = vmatprep.subr.mxu0 %v249
    %293 = vmatpush1.msra.mxu0 %v248
    %294 = vmatprep.subr.mxu0 %v251
    %295 = vmatpush1.msra.mxu0 %v250
    %296 = vmatprep.subr.mxu0 %v253
    %297 = vmatpush1.msra.mxu0 %v252
    %298 = vmatprep.subr.mxu0 %v255
    %299 = vmatpush1.msra.mxu0 %v254
    %300 = vmatprep.subr.mxu0 %v257
    %301 = vmatpush1.msra.mxu0 %v256
    %302 = vmatprep.subr.mxu0 %v259
    %303 = vmatpush1.msra.mxu0 %v258
    %304 = vmatprep.subr.mxu0 0.0
    %305 = vmatpush1.msra.mxu0 0.0
    %306 = vmatprep.subr.mxu0 0.0
    %307 = vmatpush1.msra.mxu0 0.0
    %308 = vmatprep.subr.mxu0 0.0
    %309 = vmatpush1.msra.mxu0 0.0
    %310 = vmatprep.subr.mxu0 0.0
    %311 = vmatpush1.msra.mxu0 0.0
    %312 = vmatprep.subr.mxu0 0.0
    %313 = vmatpush1.msra.mxu0 0.0
    %314 = vmatprep.subr.mxu0 0.0
    %315 = vmatpush1.msra.mxu0 0.0
    %316 = vmatprep.subr.mxu0 0.0
    %317 = vmatpush1.msra.mxu0 0.0
    %318 = vmatprep.subr.mxu0 0.0
    %319 = vmatpush1.msra.mxu0 0.0
    %320 = vmatprep.subr.mxu0 0.0
    %321 = vmatpush1.msra.mxu0 0.0
    %322 = vmatprep.subr.mxu0 0.0
    %323 = vmatpush1.msra.mxu0 0.0
    %324 = vmatprep.subr.mxu0 0.0
    %325 = vmatpush1.msra.mxu0 0.0
    %326 = vmatprep.subr.mxu0 0.0
    %327 = vmatpush1.msra.mxu0 0.0
    %328 = vmatprep.subr.mxu0 0.0
    %329 = vmatpush1.msra.mxu0 0.0
    %330 = vmatprep.subr.mxu0 0.0
    %331 = vmatpush1.msra.mxu0 0.0
    %332 = vmatprep.subr.mxu0 0.0
    %333 = vmatpush1.msra.mxu0 0.0
    %334 = vmatprep.subr.mxu0 0.0
    %335 = vmatpush1.msra.mxu0 0.0
    %336 = vmatprep.mubr.f32.mxu0 0.0
    %337 = vmatmul.mubr.f32.gmra.mrb[0].mxu0 %v226
    %v338 = vpop.f32.mrb[0].mxu0
    %v339 = vadd.f32 %v265, %v338
    %v340 = vpop.f32.mrb[0].mxu0
    %v341 = vadd.f32 %v269, %v340
    %342 = vmatprep.mubr.f32.mxu0 0.0
    %343 = vmatmul.mubr.f32.gmra.mrb[0].mxu0 %v227
    %v344 = vpop.f32.mrb[0].mxu0
    %v345 = vadd.f32 %v265, %v344
    %v346 = vpop.f32.mrb[0].mxu0
    %v347 = vadd.f32 %v269, %v346
    %348 = vdwg.mxu0
    %349 = vst [vmem:[#allocation9] sm:$0xff] %v339
    %350 = vst [vmem:[#allocation9 + $0x8] sm:$0xff] %v341
    %351 = vst [vmem:[#allocation9 + $0x10] sm:$0xff] %v345
    %352 = vst [vmem:[#allocation9 + $0x18] sm:$0xff] %v347
    // Predicated region
    $region46: #{tpu_custom_call.1} parent=1 // pred_check
      _
    $region47: #{tpu_custom_call.1} parent=1 // pred_check_branch
      %354 = sbr.rel (0) target = $region49
    $region48: #{tpu_custom_call.1} parent=1 // pred_region
      %s356 = ssub.s32 512, 512
      %357 = vsyncadd [#allocation5], %s356
      %s358 = sshll.u32 [#allocation9], 4
      %s359 = int_to_ptr.vmem [resolvable:$true] %s358
      %364 = dma.vmem_to_hbm [thread:$0]  %s359, 512, %s7, [#allocation5], 256, 256, 16
    $region49: #{tpu_custom_call.1} parent=1 // pred_fallthru
      _
    // Predicated region
    $region50: #{tpu_custom_call.1} parent=1 // pred_check
      _
    $region51: #{tpu_custom_call.1} parent=1 // pred_check_branch
      %366 = sbr.rel (0) target = $region53
    $region52: #{tpu_custom_call.1} parent=1 // pred_region
      %367 = dma.done [#allocation5], 512
    $region53: #{tpu_custom_call.1} parent=1 // pred_fallthru
      _
    %368 = vsyncpa [#allocation4], 1
    %369 = vsyncpa [#allocation7], 1
    %370 = vsyncpa [#allocation5], 1

</llo_original>
